<compile_context>
chip_gen: v7x
topology: tpu7x:2x2x1
jax: 0.10.0
libtpu: 0.0.40
codegen_flags: <defaults>
</compile_context>

<pallas_src>
import math
import functools

import jax
import jax.numpy as jnp
from jax import lax
from jax.experimental import pallas as pl
from jax.experimental.pallas import tpu as pltpu


# ---------------------------------------------------------------------------
# Generation-aware VMEM budget (v5e/v6e: 128 MiB physical, v7x: 64 MiB).
# ---------------------------------------------------------------------------
def _detect_vmem_limit_bytes():
    cap = 0
    try:
        cap = int(getattr(pltpu.get_tpu_info(), "vmem_capacity_bytes", 0))
    except Exception:
        cap = 0
    if not cap:
        cap = 64 * 1024 * 1024            # conservative fallback (v7x-sized)
    # Leave headroom for the compiler's own scratch; cap below 128 MiB parts.
    return int(min(cap * 3 // 4, 96 * 1024 * 1024))


_VMEM_LIMIT = _detect_vmem_limit_bytes()


def _choose_tile(full, preferred, min_tile=8):
    """Largest power-of-two tile <= preferred that divides `full`; else the
    whole dimension (a full-extent block is always layout-legal)."""
    if full <= preferred:
        return full
    t = preferred
    while t >= min_tile:
        if full % t == 0:
            return t
        t //= 2
    return full


def _padded_bytes(shape, itemsize):
    """Rough VMEM footprint of one buffer (last dim -> 128, 2nd-last -> 8)."""
    s = list(shape)
    if len(s) >= 1:
        s[-1] = -(-s[-1] // 128) * 128
    if len(s) >= 2:
        s[-2] = -(-s[-2] // 8) * 8
    n = itemsize
    for d in s:
        n *= d
    return n


def _assert_vmem_budget(name, nbytes):
    assert nbytes <= _VMEM_LIMIT, (
        f"{name}: estimated VMEM use {nbytes / 2**20:.1f} MiB exceeds the "
        f"per-generation limit {_VMEM_LIMIT / 2**20:.1f} MiB; shrink tiles.")


# ---------------------------------------------------------------------------
# Kernel 1: generic tiled matmul with K-axis accumulation (output projection)
# ---------------------------------------------------------------------------
def _matmul_kernel(x_ref, w_ref, o_ref, acc_ref):
    @pl.when(pl.program_id(2) == 0)
    def _init():
        acc_ref[...] = jnp.zeros_like(acc_ref)

    acc_ref[...] += jnp.dot(x_ref[...], w_ref[...],
                            preferred_element_type=jnp.float32)

    @pl.when(pl.program_id(2) == pl.num_programs(2) - 1)
    def _finalize():
        o_ref[...] = acc_ref[...].astype(o_ref.dtype)


def pallas_matmul(x, w, *, out_dtype=jnp.float32,
                  tile_m=512, tile_n=512, tile_k=1024):
    """(M, K) @ (K, N); bf16 operands, f32 VMEM accumulator over K grid axis."""
    M, K = x.shape
    K2, N = w.shape
    assert K == K2
    tm = _choose_tile(M, tile_m, min_tile=8)
    tn = _choose_tile(N, tile_n, min_tile=128)
    tk = _choose_tile(K, tile_k, min_tile=128)
    ib = jnp.dtype(x.dtype).itemsize
    wb = jnp.dtype(w.dtype).itemsize
    ob = jnp.dtype(out_dtype).itemsize
    _assert_vmem_budget(
        "pallas_matmul",
        2 * (_padded_bytes((tm, tk), ib) + _padded_bytes((tk, tn), wb)
             + _padded_bytes((tm, tn), ob)) + _padded_bytes((tm, tn), 4))
    grid = (M // tm, N // tn, K // tk)
    return pl.pallas_call(
        _matmul_kernel,
        out_shape=jax.ShapeDtypeStruct((M, N), out_dtype),
        grid=grid,
        in_specs=[
            pl.BlockSpec((tm, tk), lambda i, j, k: (i, k)),
            pl.BlockSpec((tk, tn), lambda i, j, k: (k, j)),
        ],
        out_specs=pl.BlockSpec((tm, tn), lambda i, j, k: (i, j)),
        scratch_shapes=[pltpu.VMEM((tm, tn), jnp.float32)],
        compiler_params=pltpu.CompilerParams(
            dimension_semantics=("parallel", "parallel", "arbitrary"),
            vmem_limit_bytes=_VMEM_LIMIT,
        ),
    )(x, w)


# ---------------------------------------------------------------------------
# Kernel 2: fused QKV projection with three direct outputs (x read once,
#           no wrapper-level slicing / HBM re-streaming of the fused result).
# ---------------------------------------------------------------------------
def _qkv_proj_kernel(x_ref, wq_ref, wk_ref, wv_ref,
                     q_ref, k_ref, v_ref,
                     qacc, kacc, vacc):
    kk = pl.program_id(1)

    @pl.when(kk == 0)
    def _init():
        qacc[...] = jnp.zeros_like(qacc)
        kacc[...] = jnp.zeros_like(kacc)
        vacc[...] = jnp.zeros_like(vacc)

    xb = x_ref[...]
    qacc[...] += jnp.dot(xb, wq_ref[...], preferred_element_type=jnp.float32)
    kacc[...] += jnp.dot(xb, wk_ref[...], preferred_element_type=jnp.float32)
    vacc[...] += jnp.dot(xb, wv_ref[...], preferred_element_type=jnp.float32)

    @pl.when(kk == pl.num_programs(1) - 1)
    def _finalize():
        q_ref[...] = qacc[...].astype(q_ref.dtype)
        k_ref[...] = kacc[...].astype(k_ref.dtype)
        v_ref[...] = vacc[...].astype(v_ref.dtype)


def pallas_qkv_proj(x, wq, wk, wv, *, out_dtype=jnp.bfloat16,
                    tile_m=256, tile_k=512):
    M, K = x.shape
    Nq = wq.shape[1]
    Nk = wk.shape[1]
    Nv = wv.shape[1]
    assert Nk == Nv
    tm = _choose_tile(M, tile_m, min_tile=8)
    tk = _choose_tile(K, tile_k, min_tile=128)
    ib = jnp.dtype(x.dtype).itemsize
    wb = jnp.dtype(wq.dtype).itemsize
    ob = jnp.dtype(out_dtype).itemsize
    est = 2 * (_padded_bytes((tm, tk), ib)
               + _padded_bytes((tk, Nq), wb) + 2 * _padded_bytes((tk, Nk), wb)
               + _padded_bytes((tm, Nq), ob) + 2 * _padded_bytes((tm, Nk), ob))
    est += _padded_bytes((tm, Nq), 4) + 2 * _padded_bytes((tm, Nk), 4)
    _assert_vmem_budget("pallas_qkv_proj", est)
    grid = (M // tm, K // tk)
    return pl.pallas_call(
        _qkv_proj_kernel,
        out_shape=(jax.ShapeDtypeStruct((M, Nq), out_dtype),
                   jax.ShapeDtypeStruct((M, Nk), out_dtype),
                   jax.ShapeDtypeStruct((M, Nv), out_dtype)),
        grid=grid,
        in_specs=[
            pl.BlockSpec((tm, tk), lambda i, k: (i, k)),
            pl.BlockSpec((tk, Nq), lambda i, k: (k, 0)),
            pl.BlockSpec((tk, Nk), lambda i, k: (k, 0)),
            pl.BlockSpec((tk, Nv), lambda i, k: (k, 0)),
        ],
        out_specs=(
            pl.BlockSpec((tm, Nq), lambda i, k: (i, 0)),
            pl.BlockSpec((tm, Nk), lambda i, k: (i, 0)),
            pl.BlockSpec((tm, Nv), lambda i, k: (i, 0)),
        ),
        scratch_shapes=[pltpu.VMEM((tm, Nq), jnp.float32),
                        pltpu.VMEM((tm, Nk), jnp.float32),
                        pltpu.VMEM((tm, Nv), jnp.float32)],
        compiler_params=pltpu.CompilerParams(
            dimension_semantics=("parallel", "arbitrary"),
            vmem_limit_bytes=_VMEM_LIMIT,
        ),
    )(x, wq, wk, wv)


# ---------------------------------------------------------------------------
# Kernel 3: flash-style GQA attention with group-stacked heads.
#   q: (B, T, H*D) bf16, k/v: (B, T, G*D) bf16, out: (B, T, H*D) bf16.
#   grid = (batch, q_block, kv_block); kv is innermost / "arbitrary".
#   The 1/sqrt(D) scale is already folded into the Q projection weights.
# ---------------------------------------------------------------------------
def _flash_gqa_kernel(q_ref, k_ref, v_ref, o_ref,
                      m_ref, l_ref, acc_ref,
                      *, n_heads, n_groups, head_dim, cur_pos, apply_mask):
    H, G, D = n_heads, n_groups, head_dim
    rep = H // G
    tq = q_ref.shape[1]
    tk = k_ref.shape[1]

    qi = pl.program_id(1)
    ki = pl.program_id(2)
    q_start = qi * tq
    k_start = ki * tk

    @pl.when(ki == 0)
    def _init():
        m_ref[...] = jnp.full_like(m_ref, -1e30)   # finite: no -inf -> NaN
        l_ref[...] = jnp.zeros_like(l_ref)
        acc_ref[...] = jnp.zeros_like(acc_ref)

    def _update(masked):
        q_blk = q_ref[0]                           # (tq, H*D)  bf16
        k_blk = k_ref[0]                           # (tk, G*D)  bf16
        v_blk = v_ref[0]                           # (tk, G*D)  bf16

        if masked:
            q_pos = q_start + lax.broadcasted_iota(jnp.int32, (tq, tk), 0)
            k_pos = k_start + lax.broadcasted_iota(jnp.int32, (tq, tk), 1)
            allowed = k_pos <= q_pos + cur_pos                     # (tq, tk)
            allowed = jnp.concatenate([allowed] * rep, axis=0)     # (rep*tq, tk)

        # Group-stacked formulation: the `rep` query heads of one group are
        # stacked along M -> one (rep*tq, D) x (D, tk) MXU push per group and
        # each K/V tile is read once per group (not once per head).
        for g in range(G):
            q_stack = jnp.concatenate(
                [q_blk[:, (g * rep + r) * D:(g * rep + r + 1) * D]
                 for r in range(rep)], axis=0)                     # (rep*tq, D)
            k_g = k_blk[:, g * D:(g + 1) * D]                      # (tk, D)
            v_g = v_blk[:, g * D:(g + 1) * D]                      # (tk, D)

            # scores = q_stack @ k_g^T (transpose folded into dot_general).
            s = lax.dot_general(q_stack, k_g, (((1,), (1,)), ((), ())),
                                preferred_element_type=jnp.float32)
            if masked:
                s = jnp.where(allowed, s, -1e30)

            m_prev = m_ref[g]                                      # (rep*tq, 1)
            m_new = jnp.maximum(m_prev, jnp.max(s, axis=-1, keepdims=True))
            alpha = jnp.exp(m_prev - m_new)                        # (rep*tq, 1)
            p = jnp.exp(s - m_new)                                 # f32

            l_ref[g] = alpha * l_ref[g] + jnp.sum(p, axis=-1, keepdims=True)
            pv = jnp.dot(p.astype(v_g.dtype), v_g,
                         preferred_element_type=jnp.float32)       # (rep*tq, D)
            acc_ref[g] = alpha * acc_ref[g] + pv
            m_ref[g] = m_new

    if apply_mask:
        needed = k_start <= q_start + (tq - 1) + cur_pos
        below_diag = k_start + (tk - 1) <= q_start + cur_pos       # fully visible

        @pl.when(jnp.logical_and(needed, below_diag))
        def _fast():                     # mask-free fast path (interior blocks)
            _update(masked=False)

        @pl.when(jnp.logical_and(needed, jnp.logical_not(below_diag)))
        def _straddle():                 # only diagonal-straddling blocks pay
            _update(masked=True)
    else:
        _update(masked=False)

    @pl.when(ki == pl.num_programs(2) - 1)
    def _finalize():
        parts = []
        for g in range(G):
            l_safe = jnp.maximum(l_ref[g], 1e-30)   # guard fully-masked rows
            inv_l = pl.reciprocal(l_safe, approx=True)             # EUP slot
            acc_g = acc_ref[g] * inv_l                             # (rep*tq, D)
            for r in range(rep):
                parts.append(acc_g[r * tq:(r + 1) * tq, :])
        # Single lane-dense (tq, H*D) store (heads are in increasing order).
        o_ref[0, :, :] = jnp.concatenate(parts, axis=1).astype(o_ref.dtype)


def pallas_flash_gqa_attention(q, k, v, *, n_heads, n_groups, head_dim,
                               cur_pos, apply_mask,
                               q_tile=256, kv_tile=256,
                               out_dtype=jnp.bfloat16):
    B, T, HD = q.shape
    GD = k.shape[-1]
    assert HD == n_heads * head_dim and GD == n_groups * head_dim
    if apply_mask:
        assert cur_pos >= 0
    # NOTE: 256-wide tiles match the v6e/v7x 256-wide MXU; on v5e (128-wide)
    # 128/128 tiles are an equally good choice.
    tq = _choose_tile(T, q_tile, min_tile=8)
    tk = _choose_tile(T, kv_tile, min_tile=8)
    grid = (B, T // tq, T // tk)
    # TODO(synk): for v7x (2 TensorCores) prefer tq such that B*(T//tq) >= 2
    # so both cores get work when B == 1.

    rep = n_heads // n_groups
    ib = jnp.dtype(q.dtype).itemsize
    est = 2 * (_padded_bytes((tq, HD), ib) + 2 * _padded_bytes((tk, GD), ib)
               + _padded_bytes((tq, HD), jnp.dtype(out_dtype).itemsize))
    est += (2 * n_groups * _padded_bytes((rep * tq, 1), 4)
            + n_groups * _padded_bytes((rep * tq, head_dim), 4))
    _assert_vmem_budget("flash_gqa_attention", est)

    if apply_mask:
        def kv_map(b, qi, ki):
            # Clamp: above-diagonal KV blocks repeat the previous block index,
            # so Pallas elides their HBM->VMEM DMA (compute is also skipped).
            last = (qi * tq + (tq - 1) + cur_pos) // tk
            return (b, jnp.minimum(ki, last), 0)
    else:
        def kv_map(b, qi, ki):
            return (b, ki, 0)

    kernel = functools.partial(
        _flash_gqa_kernel, n_heads=n_heads, n_groups=n_groups,
        head_dim=head_dim, cur_pos=cur_pos, apply_mask=apply_mask)

    return pl.pallas_call(
        kernel,
        out_shape=jax.ShapeDtypeStruct((B, T, HD), out_dtype),
        grid=grid,
        in_specs=[
            pl.BlockSpec((1, tq, HD), lambda b, qi, ki: (b, qi, 0)),
            pl.BlockSpec((1, tk, GD), kv_map),
            pl.BlockSpec((1, tk, GD), kv_map),
        ],
        out_specs=pl.BlockSpec((1, tq, HD), lambda b, qi, ki: (b, qi, 0)),
        scratch_shapes=[
            pltpu.VMEM((n_groups, rep * tq, 1), jnp.float32),         # m
            pltpu.VMEM((n_groups, rep * tq, 1), jnp.float32),         # l
            pltpu.VMEM((n_groups, rep * tq, head_dim), jnp.float32),  # acc
        ],
        compiler_params=pltpu.CompilerParams(
            dimension_semantics=("parallel", "parallel", "arbitrary"),
            vmem_limit_bytes=_VMEM_LIMIT,
        ),
    )(q, k, v)


# ---------------------------------------------------------------------------
# GQA module (parameters + forward glue in plain JAX, hot paths in Pallas)
# ---------------------------------------------------------------------------
class GQA:
    def __init__(self, dim, n_heads, n_groups=None, apply_decoder_mask=False,
                 key=None):
        n_groups = n_groups if n_groups else n_heads
        assert dim % n_heads == 0
        assert n_heads % n_groups == 0
        self.dim = dim
        self.n_heads = n_heads
        self.n_groups = n_groups
        self.head_dim = dim // n_heads
        self.apply_decoder_mask = apply_decoder_mask

        # Deterministic init analogous to nn.Linear (uniform(-1/sqrt(in), +)).
        # Master weights in f32 (reference / checkpoint precision); weights
        # stored already transposed: (in_features, out_features).
        key = jax.random.PRNGKey(0) if key is None else key
        k1, k2, k3, k4 = jax.random.split(key, 4)
        bound = 1.0 / math.sqrt(dim)
        self.wq = jax.random.uniform(k1, (dim, n_heads * self.head_dim),
                                     jnp.float32, -bound, bound)
        self.wk = jax.random.uniform(k2, (dim, n_groups * self.head_dim),
                                     jnp.float32, -bound, bound)
        self.wv = jax.random.uniform(k3, (dim, n_groups * self.head_dim),
                                     jnp.float32, -bound, bound)
        bound_o = 1.0 / math.sqrt(n_heads * self.head_dim)
        self.wo = jax.random.uniform(k4, (n_heads * self.head_dim, dim),
                                     jnp.float32, -bound_o, bound_o)

        # bf16 compute copies; the attention 1/sqrt(head_dim) scale is folded
        # into the Q projection weights (mathematically identical, free).
        scale = 1.0 / math.sqrt(self.head_dim)
        self._wq_c = (self.wq * scale).astype(jnp.bfloat16)
        self._wk_c = self.wk.astype(jnp.bfloat16)
        self._wv_c = self.wv.astype(jnp.bfloat16)
        self._wo_c = self.wo.astype(jnp.bfloat16)

        # TODO(synk): query_embedding / key_embedding modules and LinearCache
        # kv-caching are not instantiated here (module defaults to None).

    def __call__(self, x, cur_pos=0):
        B, T, dim = x.shape
        H, G, D = self.n_heads, self.n_groups, self.head_dim

        # Fused QKV projection: x streamed from HBM once, three bf16 outputs.
        x2 = x.reshape(B * T, dim).astype(jnp.bfloat16)
        q2, k2, v2 = pallas_qkv_proj(x2, self._wq_c, self._wk_c, self._wv_c)
        q = q2.reshape(B, T, H * D)          # contiguous reshape -> no copy
        k = k2.reshape(B, T, G * D)
        v = v2.reshape(B, T, G * D)

        # Flash GQA attention; K/V kept at G heads (no jnp.repeat), no
        # transposes, lane-dense (B, T, H*D) bf16 output.
        o = pallas_flash_gqa_attention(
            q, k, v, n_heads=H, n_groups=G, head_dim=D,
            cur_pos=cur_pos, apply_mask=self.apply_decoder_mask)

        out = pallas_matmul(o.reshape(B * T, H * D), self._wo_c,
                            out_dtype=jnp.float32)
        return out.reshape(B, T, dim)


# ---------------------------------------------------------------------------
# Pure-JAX f32 reference (mirrors the PyTorch forward) used for a check.
# ---------------------------------------------------------------------------
def gqa_reference(model: GQA, x, cur_pos=0):
    B, T, dim = x.shape
    H, G, D = model.n_heads, model.n_groups, model.head_dim
    q = (x.reshape(B * T, dim) @ model.wq).reshape(B, T, H, D)
    k = (x.reshape(B * T, dim) @ model.wk).reshape(B, T, G, D)
    v = (x.reshape(B * T, dim) @ model.wv).reshape(B, T, G, D)
    if G != H:
        r = H // G
        k = jnp.repeat(k, r, axis=2)
        v = jnp.repeat(v, r, axis=2)
    q = jnp.transpose(q, (0, 2, 1, 3))
    k = jnp.transpose(k, (0, 2, 1, 3))
    v = jnp.transpose(v, (0, 2, 1, 3))
    scores = jnp.einsum("bhqd,bhkd->bhqk", q, k) / math.sqrt(D)
    if model.apply_decoder_mask:
        row = jnp.arange(T)[:, None]
        col = jnp.arange(T)[None, :]
        allowed = col <= (row + cur_pos)
        scores = jnp.where(allowed, scores, -jnp.inf)
    attn = jax.nn.softmax(scores, axis=-1)
    o = jnp.einsum("bhqk,bhkd->bhqd", attn, v)
    o = jnp.transpose(o, (0, 2, 1, 3)).reshape(B, T, H * D)
    return o @ model.wo


if __name__ == "__main__":
    batch, seq, dim = 2, 8, 32
    n_heads, n_groups = 8, 2

    key = jax.random.PRNGKey(0)
    kx, kw = jax.random.split(key)
    x = jax.random.normal(kx, (batch, seq, dim), dtype=jnp.float32)

    model = GQA(dim=dim, n_heads=n_heads, n_groups=n_groups,
                apply_decoder_mask=True, key=kw)

    out = model(x, cur_pos=0)
    out = jax.block_until_ready(out)

    ref = gqa_reference(model, x, cur_pos=0)
    assert out.shape == (batch, seq, dim)
    max_err = float(jnp.max(jnp.abs(out - ref)))
    # bf16 operands with f32 accumulation -> tolerance set for bf16 rounding.
    assert jnp.allclose(out, ref, atol=5e-2, rtol=5e-2), f"max abs err {max_err}"

    print("KERNEL_OK")
</pallas_src>

<mosaic_0001>
module attributes {stable_mosaic.version = 11 : i64} {
  func.func @_qkv_proj_kernel(%arg0: i32, %arg1: i32, %arg2: memref<16x32xbf16, #tpu.memory_space<vmem>>, %arg3: memref<32x32xbf16, #tpu.memory_space<vmem>>, %arg4: memref<32x8xbf16, #tpu.memory_space<vmem>>, %arg5: memref<32x8xbf16, #tpu.memory_space<vmem>>, %arg6: memref<16x32xbf16, #tpu.memory_space<vmem>>, %arg7: memref<16x8xbf16, #tpu.memory_space<vmem>>, %arg8: memref<16x8xbf16, #tpu.memory_space<vmem>>, %arg9: memref<16x32xf32, #tpu.memory_space<vmem>>, %arg10: memref<16x8xf32, #tpu.memory_space<vmem>>, %arg11: memref<16x8xf32, #tpu.memory_space<vmem>>) attributes {dimension_semantics = [#tpu.dimension_semantics<parallel>, #tpu.dimension_semantics<arbitrary>], iteration_bounds = array<i64: 1, 1>, scalar_prefetch = 0 : i64, scratch_operands = 3 : i64, tpu.core_type = #tpu.core_type<tc>, window_params = [{transform_indices = @transform_0, window_bounds = array<i64: 16, 32>}, {transform_indices = @transform_1, window_bounds = array<i64: 32, 32>}, {transform_indices = @transform_2, window_bounds = array<i64: 32, 8>}, {transform_indices = @transform_3, window_bounds = array<i64: 32, 8>}, {transform_indices = @transform_4, window_bounds = array<i64: 16, 32>}, {transform_indices = @transform_5, window_bounds = array<i64: 16, 8>}, {transform_indices = @transform_6, window_bounds = array<i64: 16, 8>}]} {
    %c0_i32 = arith.constant 0 : i32
    %0 = arith.cmpi eq, %arg1, %c0_i32 : i32
    %1 = arith.extui %0 : i1 to i32
    %c0_i32_0 = arith.constant 0 : i32
    %2 = arith.cmpi ne, %1, %c0_i32_0 : i32
    scf.if %2 {
      %cst_24 = arith.constant 0.000000e+00 : f32
      %22 = vector.broadcast %cst_24 : f32 to vector<16x32xf32>
      %c0_25 = arith.constant 0 : index
      %c0_26 = arith.constant 0 : index
      %23 = vector.load %arg9[%c0_25, %c0_26] : memref<16x32xf32, #tpu.memory_space<vmem>>, vector<16x32xf32>
      tpu.vector_store %arg9[%c0_25, %c0_26], %22 {strides = array<i32>} : memref<16x32xf32, #tpu.memory_space<vmem>>, vector<16x32xf32>,
      %cst_27 = arith.constant 0.000000e+00 : f32
      %24 = vector.broadcast %cst_27 : f32 to vector<16x8xf32>
      %c0_28 = arith.constant 0 : index
      %c0_29 = arith.constant 0 : index
      %25 = vector.load %arg10[%c0_28, %c0_29] : memref<16x8xf32, #tpu.memory_space<vmem>>, vector<16x8xf32>
      tpu.vector_store %arg10[%c0_28, %c0_29], %24 {strides = array<i32>} : memref<16x8xf32, #tpu.memory_space<vmem>>, vector<16x8xf32>,
      %cst_30 = arith.constant 0.000000e+00 : f32
      %26 = vector.broadcast %cst_30 : f32 to vector<16x8xf32>
      %c0_31 = arith.constant 0 : index
      %c0_32 = arith.constant 0 : index
      %27 = vector.load %arg11[%c0_31, %c0_32] : memref<16x8xf32, #tpu.memory_space<vmem>>, vector<16x8xf32>
      tpu.vector_store %arg11[%c0_31, %c0_32], %26 {strides = array<i32>} : memref<16x8xf32, #tpu.memory_space<vmem>>, vector<16x8xf32>,
    } else {
    }
    %c0 = arith.constant 0 : index
    %c0_1 = arith.constant 0 : index
    %3 = vector.load %arg2[%c0, %c0_1] : memref<16x32xbf16, #tpu.memory_space<vmem>>, vector<16x32xbf16>
    %c0_2 = arith.constant 0 : index
    %c0_3 = arith.constant 0 : index
    %4 = vector.load %arg9[%c0_2, %c0_3] : memref<16x32xf32, #tpu.memory_space<vmem>>, vector<16x32xf32>
    %c0_4 = arith.constant 0 : index
    %c0_5 = arith.constant 0 : index
    %5 = vector.load %arg3[%c0_4, %c0_5] : memref<32x32xbf16, #tpu.memory_space<vmem>>, vector<32x32xbf16>
    %cst = arith.constant dense<0.000000e+00> : vector<16x32xf32>
    %6 = tpu.matmul %3, %5, %cst {dimension_numbers = #tpu.dot_dimension_numbers<[1], [0], [0], [1], [0, 0, 1, 1], [], []>} : vector<16x32xbf16>, vector<32x32xbf16>, vector<16x32xf32> -> vector<16x32xf32>
    %7 = arith.addf %4, %6 : vector<16x32xf32>
    %c0_6 = arith.constant 0 : index
    %c0_7 = arith.constant 0 : index
    %8 = vector.load %arg9[%c0_6, %c0_7] : memref<16x32xf32, #tpu.memory_space<vmem>>, vector<16x32xf32>
    tpu.vector_store %arg9[%c0_6, %c0_7], %7 {strides = array<i32>} : memref<16x32xf32, #tpu.memory_space<vmem>>, vector<16x32xf32>,
    %c0_8 = arith.constant 0 : index
    %c0_9 = arith.constant 0 : index
    %9 = vector.load %arg10[%c0_8, %c0_9] : memref<16x8xf32, #tpu.memory_space<vmem>>, vector<16x8xf32>
    %c0_10 = arith.constant 0 : index
    %c0_11 = arith.constant 0 : index
    %10 = vector.load %arg4[%c0_10, %c0_11] : memref<32x8xbf16, #tpu.memory_space<vmem>>, vector<32x8xbf16>
    %cst_12 = arith.constant dense<0.000000e+00> : vector<16x8xf32>
    %11 = tpu.matmul %3, %10, %cst_12 {dimension_numbers = #tpu.dot_dimension_numbers<[1], [0], [0], [1], [0, 0, 1, 1], [], []>} : vector<16x32xbf16>, vector<32x8xbf16>, vector<16x8xf32> -> vector<16x8xf32>
    %12 = arith.addf %9, %11 : vector<16x8xf32>
    %c0_13 = arith.constant 0 : index
    %c0_14 = arith.constant 0 : index
    %13 = vector.load %arg10[%c0_13, %c0_14] : memref<16x8xf32, #tpu.memory_space<vmem>>, vector<16x8xf32>
    tpu.vector_store %arg10[%c0_13, %c0_14], %12 {strides = array<i32>} : memref<16x8xf32, #tpu.memory_space<vmem>>, vector<16x8xf32>,
    %c0_15 = arith.constant 0 : index
    %c0_16 = arith.constant 0 : index
    %14 = vector.load %arg11[%c0_15, %c0_16] : memref<16x8xf32, #tpu.memory_space<vmem>>, vector<16x8xf32>
    %c0_17 = arith.constant 0 : index
    %c0_18 = arith.constant 0 : index
    %15 = vector.load %arg5[%c0_17, %c0_18] : memref<32x8xbf16, #tpu.memory_space<vmem>>, vector<32x8xbf16>
    %cst_19 = arith.constant dense<0.000000e+00> : vector<16x8xf32>
    %16 = tpu.matmul %3, %15, %cst_19 {dimension_numbers = #tpu.dot_dimension_numbers<[1], [0], [0], [1], [0, 0, 1, 1], [], []>} : vector<16x32xbf16>, vector<32x8xbf16>, vector<16x8xf32> -> vector<16x8xf32>
    %17 = arith.addf %14, %16 : vector<16x8xf32>
    %c0_20 = arith.constant 0 : index
    %c0_21 = arith.constant 0 : index
    %18 = vector.load %arg11[%c0_20, %c0_21] : memref<16x8xf32, #tpu.memory_space<vmem>>, vector<16x8xf32>
    tpu.vector_store %arg11[%c0_20, %c0_21], %17 {strides = array<i32>} : memref<16x8xf32, #tpu.memory_space<vmem>>, vector<16x8xf32>,
    %c0_i32_22 = arith.constant 0 : i32
    %19 = arith.cmpi eq, %arg1, %c0_i32_22 : i32
    %20 = arith.extui %19 : i1 to i32
    %c0_i32_23 = arith.constant 0 : i32
    %21 = arith.cmpi ne, %20, %c0_i32_23 : i32
    scf.if %21 {
      %c0_24 = arith.constant 0 : index
      %c0_25 = arith.constant 0 : index
      %22 = vector.load %arg9[%c0_24, %c0_25] : memref<16x32xf32, #tpu.memory_space<vmem>>, vector<16x32xf32>
      %23 = arith.truncf %22 : vector<16x32xf32> to vector<16x32xbf16>
      %c0_26 = arith.constant 0 : index
      %c0_27 = arith.constant 0 : index
      %24 = vector.load %arg6[%c0_26, %c0_27] : memref<16x32xbf16, #tpu.memory_space<vmem>>, vector<16x32xbf16>
      tpu.vector_store %arg6[%c0_26, %c0_27], %23 {strides = array<i32>} : memref<16x32xbf16, #tpu.memory_space<vmem>>, vector<16x32xbf16>,
      %c0_28 = arith.constant 0 : index
      %c0_29 = arith.constant 0 : index
      %25 = vector.load %arg10[%c0_28, %c0_29] : memref<16x8xf32, #tpu.memory_space<vmem>>, vector<16x8xf32>
      %26 = arith.truncf %25 : vector<16x8xf32> to vector<16x8xbf16>
      %c0_30 = arith.constant 0 : index
      %c0_31 = arith.constant 0 : index
      %27 = vector.load %arg7[%c0_30, %c0_31] : memref<16x8xbf16, #tpu.memory_space<vmem>>, vector<16x8xbf16>
      tpu.vector_store %arg7[%c0_30, %c0_31], %26 {strides = array<i32>} : memref<16x8xbf16, #tpu.memory_space<vmem>>, vector<16x8xbf16>,
      %c0_32 = arith.constant 0 : index
      %c0_33 = arith.constant 0 : index
      %28 = vector.load %arg11[%c0_32, %c0_33] : memref<16x8xf32, #tpu.memory_space<vmem>>, vector<16x8xf32>
      %29 = arith.truncf %28 : vector<16x8xf32> to vector<16x8xbf16>
      %c0_34 = arith.constant 0 : index
      %c0_35 = arith.constant 0 : index
      %30 = vector.load %arg8[%c0_34, %c0_35] : memref<16x8xbf16, #tpu.memory_space<vmem>>, vector<16x8xbf16>
      tpu.vector_store %arg8[%c0_34, %c0_35], %29 {strides = array<i32>} : memref<16x8xbf16, #tpu.memory_space<vmem>>, vector<16x8xbf16>,
    } else {
    }
    return
  }
  func.func @transform_0(%arg0: i32, %arg1: i32) -> (i32, i32) {
    %c0_i32 = arith.constant 0 : i32
    return %arg0, %arg1 : i32, i32
  }
  func.func @transform_1(%arg0: i32, %arg1: i32) -> (i32, i32) {
    %c0_i32 = arith.constant 0 : i32
    %c0_i32_0 = arith.constant 0 : i32
    return %arg1, %c0_i32 : i32, i32
  }
  func.func @transform_2(%arg0: i32, %arg1: i32) -> (i32, i32) {
    %c0_i32 = arith.constant 0 : i32
    %c0_i32_0 = arith.constant 0 : i32
    return %arg1, %c0_i32 : i32, i32
  }
  func.func @transform_3(%arg0: i32, %arg1: i32) -> (i32, i32) {
    %c0_i32 = arith.constant 0 : i32
    %c0_i32_0 = arith.constant 0 : i32
    return %arg1, %c0_i32 : i32, i32
  }
  func.func @transform_4(%arg0: i32, %arg1: i32) -> (i32, i32) {
    %c0_i32 = arith.constant 0 : i32
    %c0_i32_0 = arith.constant 0 : i32
    return %arg0, %c0_i32 : i32, i32
  }
  func.func @transform_5(%arg0: i32, %arg1: i32) -> (i32, i32) {
    %c0_i32 = arith.constant 0 : i32
    %c0_i32_0 = arith.constant 0 : i32
    return %arg0, %c0_i32 : i32, i32
  }
  func.func @transform_6(%arg0: i32, %arg1: i32) -> (i32, i32) {
    %c0_i32 = arith.constant 0 : i32
    %c0_i32_0 = arith.constant 0 : i32
    return %arg0, %c0_i32 : i32, i32
  }
}

</mosaic_0001>

<llo_original>
// kernel: tpu_custom_call.1
$region0: #{tpu_custom_call.1}
  #allocation0 [shape = 'u32[]', space=smem, size = 0x4, offset = 0x4, fixed_abs, tag = 'smem constant byte address 0x4 - core index']
  #allocation1 [shape = 'u32[144,128]{1,0:T(1,128)}', space=vmem, size = 0x12000, scoped, tag = 'internal scratch']
  #allocation2 [shape = 'f32[16,32]{1,0:T(8,128)}', space=vmem, size = 0x2000, scoped, tag = 'scratch operand']
  #allocation3 [shape = 'f32[16,8]{1,0:T(8,128)}', space=vmem, size = 0x2000, scoped, tag = 'scratch operand']
  #allocation4 [shape = 'f32[16,8]{1,0:T(8,128)}', space=vmem, size = 0x2000, scoped, tag = 'scratch operand']
  %s0 = inlined_call_operand.vmem [shape: bf16[16,32], index: 0, kind: input, shape index: {}]
  %s1 = inlined_call_operand.vmem [shape: bf16[32,32], index: 1, kind: input, shape index: {}]
  %s2 = inlined_call_operand.vmem [shape: bf16[32,8], index: 2, kind: input, shape index: {}]
  %s3 = inlined_call_operand.vmem [shape: bf16[32,8], index: 3, kind: input, shape index: {}]
  %s4 = inlined_call_operand.hbm [shape: bf16[16,32], index: 4, kind: output, shape index: {0}]
  %s5 = inlined_call_operand.vmem [shape: bf16[16,8], index: 5, kind: output, shape index: {1}]
  %s6 = inlined_call_operand.vmem [shape: bf16[16,8], index: 6, kind: output, shape index: {2}]
  %7 = xla_tuple %s4, %s5, %s6
  %s8 = sld [smem:[#allocation0]]
  $region50: #{tpu_custom_call.1} parent=0
    _
  %s10 = ssub.s32 1, %s8
  %s11 = scalar_select 0, %s10, %s8
  $region1: #{tpu_custom_call.1} parent=0
    #allocation5 [shape = 'u8[4096]{0}', space=vmem, size = 0x1000, scoped, tag = 'output window, operand 0, single buffered']
    #allocation6 [shape = 's32[1]{0}', space=sflag, size = 0x4, scoped, tag = 'scoped memory for tpu_custom_call.1']
    %12 = vsyncpa [#allocation6], 0
    // Predicated region
    $region2: #{tpu_custom_call.1} parent=1 // pred_check
      _
    $region3: #{tpu_custom_call.1} parent=1 // pred_check_branch
      %14 = sbr.rel (0) target = $region5
    $region4: #{tpu_custom_call.1} parent=1 // pred_region
      _
    $region5: #{tpu_custom_call.1} parent=1 // pred_fallthru
      _
    // Predicated region
    $region6: #{tpu_custom_call.1} parent=1 // pred_check
      _
    $region7: #{tpu_custom_call.1} parent=1 // pred_check_branch
      %16 = sbr.rel (0) target = $region9
    $region8: #{tpu_custom_call.1} parent=1 // pred_region
      _
    $region9: #{tpu_custom_call.1} parent=1 // pred_fallthru
      _
    // Predicated region
    $region10: #{tpu_custom_call.1} parent=1 // pred_check
      _
    $region11: #{tpu_custom_call.1} parent=1 // pred_check_branch
      %18 = sbr.rel (0) target = $region13
    $region12: #{tpu_custom_call.1} parent=1 // pred_region
      _
    $region13: #{tpu_custom_call.1} parent=1 // pred_fallthru
      _
    // Predicated region
    $region14: #{tpu_custom_call.1} parent=1 // pred_check
      _
    $region15: #{tpu_custom_call.1} parent=1 // pred_check_branch
      %20 = sbr.rel (0) target = $region17
    $region16: #{tpu_custom_call.1} parent=1 // pred_region
      _
    $region17: #{tpu_custom_call.1} parent=1 // pred_fallthru
      _
    %p22 = scmp.eq.s32.totalorder 0, 0
    // Predicated region
    $region18: #{tpu_custom_call.1} parent=1 // pred_check
      %p23 = pneg %p22
    $region19: #{tpu_custom_call.1} parent=1 // pred_check_branch
      %25 = sbr.rel (%p23) target = $region21
    $region20: #{tpu_custom_call.1} parent=1 // pred_region
      %vm26 = vcmask 261120
      %27 = vst.msk [vmem:[#allocation2] sm:$0xff] %vm26, 0.0
      %28 = vst.msk [vmem:[#allocation2 + $0x8] sm:$0xff] %vm26, 0.0
      %vm29 = vcmask 64512
      %30 = vst.msk [vmem:[#allocation3] sm:$0xff] %vm29, 0.0
      %31 = vst.msk [vmem:[#allocation3 + $0x8] sm:$0xff] %vm29, 0.0
      %32 = vst.msk [vmem:[#allocation4] sm:$0xff] %vm29, 0.0
      %33 = vst.msk [vmem:[#allocation4 + $0x8] sm:$0xff] %vm29, 0.0
    $region21: #{tpu_custom_call.1} parent=1 // pred_fallthru
      _
    %v34 = vld [vmem:[%s0] sm:$0xf]
    %v35 = vld [vmem:[%s0 + $0x4] sm:$0xf]
    %v36 = vld [vmem:[#allocation2] sm:$0xff]
    %v37 = vld [vmem:[#allocation2 + $0x8] sm:$0xff]
    %v38 = vld [vmem:[%s1] sm:$0xf]
    %v39 = vld [vmem:[%s1 + $0x4] sm:$0xf]
    %v40 = vld [vmem:[%s1 + $0x8] sm:$0xf]
    %v41 = vld [vmem:[%s1 + $0xc] sm:$0xf]
    %v44 = vunpack.c.l.b16 %v34
    %v45 = vunpack.c.l.b16 %v35
    %v46 = vpack.c.b16 %v45, %v44
    %v51 = vunpack.c.l.b16 %v38
    %v52 = vunpack.c.l.b16 %v39
    %v53 = vunpack.c.l.b16 %v40
    %v54 = vunpack.c.l.b16 %v41
    %v55 = vpack.c.b16 %v52, %v51
    %v56 = vpack.c.b16 %v54, %v53
    %vm59 = vcmask 261120
    %v61 = vsel %vm59, %v46, 0
    %63 = vmatprep.subr.bf16.mxu0 0
    %64 = vmatpush1.bf16.msra.mxu0 %v55
    %65 = vmatprep.subr.bf16.mxu0 0
    %66 = vmatpush1.bf16.msra.mxu0 %v56
    %67 = vmatprep.subr.bf16.mxu0 0
    %68 = vmatpush1.bf16.msra.mxu0 0
    %69 = vmatprep.subr.bf16.mxu0 0
    %70 = vmatpush1.bf16.msra.mxu0 0
    %71 = vmatprep.subr.bf16.mxu0 0
    %72 = vmatpush1.bf16.msra.mxu0 0
    %73 = vmatprep.subr.bf16.mxu0 0
    %74 = vmatpush1.bf16.msra.mxu0 0
    %75 = vmatprep.subr.bf16.mxu0 0
    %76 = vmatpush1.bf16.msra.mxu0 0
    %77 = vmatprep.subr.bf16.mxu0 0
    %78 = vmatpush1.bf16.msra.mxu0 0
    %79 = vmatprep.subr.bf16.mxu0 0
    %80 = vmatpush1.bf16.msra.mxu0 0
    %81 = vmatprep.subr.bf16.mxu0 0
    %82 = vmatpush1.bf16.msra.mxu0 0
    %83 = vmatprep.subr.bf16.mxu0 0
    %84 = vmatpush1.bf16.msra.mxu0 0
    %85 = vmatprep.subr.bf16.mxu0 0
    %86 = vmatpush1.bf16.msra.mxu0 0
    %87 = vmatprep.subr.bf16.mxu0 0
    %88 = vmatpush1.bf16.msra.mxu0 0
    %89 = vmatprep.subr.bf16.mxu0 0
    %90 = vmatpush1.bf16.msra.mxu0 0
    %91 = vmatprep.subr.bf16.mxu0 0
    %92 = vmatpush1.bf16.msra.mxu0 0
    %93 = vmatprep.subr.bf16.mxu0 0
    %94 = vmatpush1.bf16.msra.mxu0 0
    %95 = vmatprep.mubr.bf16.mxu0 0
    %96 = vmatmul.mubr.bf16.gmra.mrb[0].mxu0 %v61
    %v97 = vpop.f32.mrb[0].mxu0
    %v98 = vadd.f32 0.0, %v97
    %v99 = vpop.f32.mrb[0].mxu0
    %v100 = vpop.f32.mrb[0].mxu0
    %v101 = vadd.f32 0.0, %v100
    %v102 = vpop.f32.mrb[0].mxu0
    %103 = vdwg.mxu0
    %v104 = vadd.f32 %v36, %v98
    %v105 = vadd.f32 %v37, %v101
    %106 = vst.msk [vmem:[#allocation2] sm:$0xff] %vm59, %v104
    %107 = vst.msk [vmem:[#allocation2 + $0x8] sm:$0xff] %vm59, %v105
    %v108 = vld [vmem:[#allocation3] sm:$0xff]
    %v109 = vld [vmem:[#allocation3 + $0x8] sm:$0xff]
    %v110 = vld [vmem:[%s2] sm:$0xf]
    %v111 = vld [vmem:[%s2 + $0x4] sm:$0xf]
    %v112 = vld [vmem:[%s2 + $0x8] sm:$0xf]
    %v113 = vld [vmem:[%s2 + $0xc] sm:$0xf]
    %v118 = vunpack.c.l.b16 %v110
    %v119 = vunpack.c.l.b16 %v111
    %v120 = vunpack.c.l.b16 %v112
    %v121 = vunpack.c.l.b16 %v113
    %v122 = vpack.c.b16 %v119, %v118
    %v123 = vpack.c.b16 %v121, %v120
    %126 = vmatprep.subr.bf16.mxu0 0
    %127 = vmatpush1.bf16.msra.mxu0 %v122
    %128 = vmatprep.subr.bf16.mxu0 0
    %129 = vmatpush1.bf16.msra.mxu0 %v123
    %130 = vmatprep.subr.bf16.mxu0 0
    %131 = vmatpush1.bf16.msra.mxu0 0
    %132 = vmatprep.subr.bf16.mxu0 0
    %133 = vmatpush1.bf16.msra.mxu0 0
    %134 = vmatprep.subr.bf16.mxu0 0
    %135 = vmatpush1.bf16.msra.mxu0 0
    %136 = vmatprep.subr.bf16.mxu0 0
    %137 = vmatpush1.bf16.msra.mxu0 0
    %138 = vmatprep.subr.bf16.mxu0 0
    %139 = vmatpush1.bf16.msra.mxu0 0
    %140 = vmatprep.subr.bf16.mxu0 0
    %141 = vmatpush1.bf16.msra.mxu0 0
    %142 = vmatprep.subr.bf16.mxu0 0
    %143 = vmatpush1.bf16.msra.mxu0 0
    %144 = vmatprep.subr.bf16.mxu0 0
    %145 = vmatpush1.bf16.msra.mxu0 0
    %146 = vmatprep.subr.bf16.mxu0 0
    %147 = vmatpush1.bf16.msra.mxu0 0
    %148 = vmatprep.subr.bf16.mxu0 0
    %149 = vmatpush1.bf16.msra.mxu0 0
    %150 = vmatprep.subr.bf16.mxu0 0
    %151 = vmatpush1.bf16.msra.mxu0 0
    %152 = vmatprep.subr.bf16.mxu0 0
    %153 = vmatpush1.bf16.msra.mxu0 0
    %154 = vmatprep.subr.bf16.mxu0 0
    %155 = vmatpush1.bf16.msra.mxu0 0
    %156 = vmatprep.subr.bf16.mxu0 0
    %157 = vmatpush1.bf16.msra.mxu0 0
    %158 = vmatprep.mubr.bf16.mxu0 0
    %159 = vmatmul.mubr.bf16.gmra.mrb[0].mxu0 %v61
    %v160 = vpop.f32.mrb[0].mxu0
    %v161 = vadd.f32 0.0, %v160
    %v162 = vpop.f32.mrb[0].mxu0
    %v163 = vpop.f32.mrb[0].mxu0
    %v164 = vadd.f32 0.0, %v163
    %v165 = vpop.f32.mrb[0].mxu0
    %166 = vdwg.mxu0
    %v167 = vadd.f32 %v108, %v161
    %v168 = vadd.f32 %v109, %v164
    %vm169 = vcmask 64512
    %170 = vst.msk [vmem:[#allocation3] sm:$0xff] %vm169, %v167
    %171 = vst.msk [vmem:[#allocation3 + $0x8] sm:$0xff] %vm169, %v168
    %v172 = vld [vmem:[#allocation4] sm:$0xff]
    %v173 = vld [vmem:[#allocation4 + $0x8] sm:$0xff]
    %v174 = vld [vmem:[%s3] sm:$0xf]
    %v175 = vld [vmem:[%s3 + $0x4] sm:$0xf]
    %v176 = vld [vmem:[%s3 + $0x8] sm:$0xf]
    %v177 = vld [vmem:[%s3 + $0xc] sm:$0xf]
    %v182 = vunpack.c.l.b16 %v174
    %v183 = vunpack.c.l.b16 %v175
    %v184 = vunpack.c.l.b16 %v176
    %v185 = vunpack.c.l.b16 %v177
    %v186 = vpack.c.b16 %v183, %v182
    %v187 = vpack.c.b16 %v185, %v184
    %190 = vmatprep.subr.bf16.mxu0 0
    %191 = vmatpush1.bf16.msra.mxu0 %v186
    %192 = vmatprep.subr.bf16.mxu0 0
    %193 = vmatpush1.bf16.msra.mxu0 %v187
    %194 = vmatprep.subr.bf16.mxu0 0
    %195 = vmatpush1.bf16.msra.mxu0 0
    %196 = vmatprep.subr.bf16.mxu0 0
    %197 = vmatpush1.bf16.msra.mxu0 0
    %198 = vmatprep.subr.bf16.mxu0 0
    %199 = vmatpush1.bf16.msra.mxu0 0
    %200 = vmatprep.subr.bf16.mxu0 0
    %201 = vmatpush1.bf16.msra.mxu0 0
    %202 = vmatprep.subr.bf16.mxu0 0
    %203 = vmatpush1.bf16.msra.mxu0 0
    %204 = vmatprep.subr.bf16.mxu0 0
    %205 = vmatpush1.bf16.msra.mxu0 0
    %206 = vmatprep.subr.bf16.mxu0 0
    %207 = vmatpush1.bf16.msra.mxu0 0
    %208 = vmatprep.subr.bf16.mxu0 0
    %209 = vmatpush1.bf16.msra.mxu0 0
    %210 = vmatprep.subr.bf16.mxu0 0
    %211 = vmatpush1.bf16.msra.mxu0 0
    %212 = vmatprep.subr.bf16.mxu0 0
    %213 = vmatpush1.bf16.msra.mxu0 0
    %214 = vmatprep.subr.bf16.mxu0 0
    %215 = vmatpush1.bf16.msra.mxu0 0
    %216 = vmatprep.subr.bf16.mxu0 0
    %217 = vmatpush1.bf16.msra.mxu0 0
    %218 = vmatprep.subr.bf16.mxu0 0
    %219 = vmatpush1.bf16.msra.mxu0 0
    %220 = vmatprep.subr.bf16.mxu0 0
    %221 = vmatpush1.bf16.msra.mxu0 0
    %222 = vmatprep.mubr.bf16.mxu0 0
    %223 = vmatmul.mubr.bf16.gmra.mrb[0].mxu0 %v61
    %v224 = vpop.f32.mrb[0].mxu0
    %v225 = vadd.f32 0.0, %v224
    %v226 = vpop.f32.mrb[0].mxu0
    %v227 = vpop.f32.mrb[0].mxu0
    %v228 = vadd.f32 0.0, %v227
    %v229 = vpop.f32.mrb[0].mxu0
    %230 = vdwg.mxu0
    %v231 = vadd.f32 %v172, %v225
    %v232 = vadd.f32 %v173, %v228
    %233 = vst.msk [vmem:[#allocation4] sm:$0xff] %vm169, %v231
    %234 = vst.msk [vmem:[#allocation4 + $0x8] sm:$0xff] %vm169, %v232
    // Predicated region
    $region22: #{tpu_custom_call.1} parent=1 // pred_check
      %p235 = pneg %p22
    $region23: #{tpu_custom_call.1} parent=1 // pred_check_branch
      %237 = sbr.rel (%p235) target = $region25
    $region24: #{tpu_custom_call.1} parent=1 // pred_region
      %v238 = vld [vmem:[#allocation2] sm:$0xff]
      %v239 = vld [vmem:[#allocation2 + $0x8] sm:$0xff]
      %v240 = vpack.c.bf16 %v239, %v238
      %v242 = vunpack.c.l.b16 %v240
      %v243 = vunpack.c.h.b16 %v240
      %v244 = vpack.c.b16 %v242, %v242
      %v245 = vpack.c.b16 %v243, %v243
      %vm248 = vcmask 257024
      %249 = vst.msk [vmem:[#allocation5] sm:$0xf] %vm248, %v244
      %250 = vst.msk [vmem:[#allocation5 + $0x4] sm:$0xf] %vm248, %v245
      %v251 = vld [vmem:[#allocation3] sm:$0xff]
      %v252 = vld [vmem:[#allocation3 + $0x8] sm:$0xff]
      %v253 = vpack.c.bf16 %v252, %v251
      %v255 = vunpack.c.l.b16 %v253
      %v256 = vunpack.c.h.b16 %v253
      %v257 = vpack.c.b16 %v255, %v255
      %v258 = vpack.c.b16 %v256, %v256
      %vm261 = vcmask 60416
      %262 = vst.msk [vmem:[%s5] sm:$0xf] %vm261, %v257
      %263 = vst.msk [vmem:[%s5 + $0x4] sm:$0xf] %vm261, %v258
      %v264 = vld [vmem:[#allocation4] sm:$0xff]
      %v265 = vld [vmem:[#allocation4 + $0x8] sm:$0xff]
      %v266 = vpack.c.bf16 %v265, %v264
      %v268 = vunpack.c.l.b16 %v266
      %v269 = vunpack.c.h.b16 %v266
      %v270 = vpack.c.b16 %v268, %v268
      %v271 = vpack.c.b16 %v269, %v269
      %274 = vst.msk [vmem:[%s6] sm:$0xf] %vm261, %v270
      %275 = vst.msk [vmem:[%s6 + $0x4] sm:$0xf] %vm261, %v271
    $region25: #{tpu_custom_call.1} parent=1 // pred_fallthru
      _
    // Predicated region
    $region26: #{tpu_custom_call.1} parent=1 // pred_check
      _
    $region27: #{tpu_custom_call.1} parent=1 // pred_check_branch
      %277 = sbr.rel (0) target = $region29
    $region28: #{tpu_custom_call.1} parent=1 // pred_region
      %s279 = ssub.s32 128, 128
      %280 = vsyncadd [#allocation6], %s279
      %s281 = sshll.u32 [#allocation5], 4
      %s282 = int_to_ptr.vmem [resolvable:$true] %s281
      %287 = dma.vmem_to_hbm [thread:$0]  %s282, 128, %s4, [#allocation6], 64, 64, 4
    $region29: #{tpu_custom_call.1} parent=1 // pred_fallthru
      _
    // Predicated region
    $region30: #{tpu_custom_call.1} parent=1 // pred_check
      _
    $region31: #{tpu_custom_call.1} parent=1 // pred_check_branch
      %289 = sbr.rel (0) target = $region33
    $region32: #{tpu_custom_call.1} parent=1 // pred_region
      _
    $region33: #{tpu_custom_call.1} parent=1 // pred_fallthru
      _
    // Predicated region
    $region34: #{tpu_custom_call.1} parent=1 // pred_check
      _
    $region35: #{tpu_custom_call.1} parent=1 // pred_check_branch
      %291 = sbr.rel (0) target = $region37
    $region36: #{tpu_custom_call.1} parent=1 // pred_region
      _
    $region37: #{tpu_custom_call.1} parent=1 // pred_fallthru
      _
    // Predicated region
    $region38: #{tpu_custom_call.1} parent=1 // pred_check
      _
    $region39: #{tpu_custom_call.1} parent=1 // pred_check_branch
      %293 = sbr.rel (0) target = $region41
    $region40: #{tpu_custom_call.1} parent=1 // pred_region
      %294 = dma.done [#allocation6], 128
    $region41: #{tpu_custom_call.1} parent=1 // pred_fallthru
      _
    // Predicated region
    $region42: #{tpu_custom_call.1} parent=1 // pred_check
      _
    $region43: #{tpu_custom_call.1} parent=1 // pred_check_branch
      %296 = sbr.rel (0) target = $region45
    $region44: #{tpu_custom_call.1} parent=1 // pred_region
      _
    $region45: #{tpu_custom_call.1} parent=1 // pred_fallthru
      _
    // Predicated region
    $region46: #{tpu_custom_call.1} parent=1 // pred_check
      _
    $region47: #{tpu_custom_call.1} parent=1 // pred_check_branch
      %298 = sbr.rel (0) target = $region49
    $region48: #{tpu_custom_call.1} parent=1 // pred_region
      _
    $region49: #{tpu_custom_call.1} parent=1 // pred_fallthru
      _
    %299 = vsyncpa [#allocation6], 1

</llo_original>
